<compile_context>
chip_gen: v6e
topology: v6e:2x2x1
jax: 0.10.0
libtpu: 0.0.40
codegen_flags: <defaults>
</compile_context>

<pallas_src>
import functools

import jax
import jax.numpy as jnp
from jax.experimental import pallas as pl
from jax.experimental.pallas import tpu as pltpu


# ----------------------------------------------------------------------------
# Fused kernel: (im2col matmul conv + ReLU) -> (1x1 conv head) -> online
#               soft-argmax over pixels -> normalized (x, y) per keypoint.
#
# Grid: (batch, row_tile).  The row_tile axis is a reduction ("arbitrary"):
# per-keypoint online-softmax statistics live in VMEM scratch and the
# (2, Kpad) coordinate block is written once at the last tile of each batch.
# ----------------------------------------------------------------------------
def _pose_fused_kernel(x_ref, coords_ref, w1_ref, b1_ref, w2_ref, b2_ref,
                       o_ref, m_sc, l_sc, sx_sc, sy_sc, *, inv_norm):
    t = pl.program_id(1)
    n_t = pl.num_programs(1)

    @pl.when(t == 0)
    def _init():
        m_sc[...] = jnp.full(m_sc.shape, -jnp.inf, dtype=jnp.float32)
        l_sc[...] = jnp.zeros_like(l_sc)
        sx_sc[...] = jnp.zeros_like(sx_sc)
        sy_sc[...] = jnp.zeros_like(sy_sc)

    # --- stem conv (im2col matmul) + bias + ReLU: bf16 MXU, f32 accumulation
    h = jnp.dot(x_ref[...], w1_ref[...], preferred_element_type=jnp.float32)
    h = jnp.maximum(h + b1_ref[...], 0.0)                       # (tile_hw, HIDP) f32

    # --- keypoint head (1x1 conv) + bias
    hm = jnp.dot(h.astype(jnp.bfloat16), w2_ref[...],
                 preferred_element_type=jnp.float32) + b2_ref[...]  # (tile_hw, KP)

    # --- online softmax (soft-argmax) over pixels; keypoints live on lanes
    c = coords_ref[...]                                          # (tile_hw, 2) f32
    xs = c[:, 0:1]                                               # pixel x (column)
    ys = c[:, 1:2]                                               # pixel y (row)

    m_tile = jnp.max(hm, axis=0, keepdims=True)                  # (1, KP)
    m_new = jnp.maximum(m_sc[...], m_tile)
    alpha = jnp.exp(m_sc[...] - m_new)
    p = jnp.exp(hm - m_new)                                      # (tile_hw, KP)

    l_sc[...] = alpha * l_sc[...] + jnp.sum(p, axis=0, keepdims=True)
    sx_sc[...] = alpha * sx_sc[...] + jnp.sum(p * xs, axis=0, keepdims=True)
    sy_sc[...] = alpha * sy_sc[...] + jnp.sum(p * ys, axis=0, keepdims=True)
    m_sc[...] = m_new

    @pl.when(t == n_t - 1)
    def _finalize():
        inv_l = pl.reciprocal(l_sc[...], approx=True)            # EUP vrcp
        ex = sx_sc[...] * inv_l * inv_norm                       # result = r / shape
        ey = sy_sc[...] * inv_l * inv_norm
        o_ref[...] = jnp.concatenate([ex, ey], axis=0)           # (2, KP)


# ----------------------------------------------------------------------------
# Wrapper helpers
# ----------------------------------------------------------------------------
def _round_up(x, m):
    return ((x + m - 1) // m) * m


def _pad2(x, shape):
    return jnp.pad(x, [(0, s - d) for s, d in zip(shape, x.shape)])


def _im2col_3x3(x_nhwc):
    """3x3 patches, zero-pad=1, stride=1.  (B,H,W,C) -> (B, H*W, 9*C)."""
    B, H, W, C = x_nhwc.shape
    xp = jnp.pad(x_nhwc, ((0, 0), (1, 1), (1, 1), (0, 0)))
    taps = [xp[:, dy:dy + H, dx:dx + W, :] for dy in range(3) for dx in range(3)]
    cols = jnp.concatenate(taps, axis=-1)                        # (B,H,W,9C)
    return cols.reshape(B, H * W, 9 * C)


def _pick_tile_h(H, W, row_tile):
    """Largest divisor of H whose tile (tile_h*W rows) fits the row budget."""
    tile_h = max(1, min(H, row_tile // max(W, 1)))
    while H % tile_h:
        tile_h -= 1
    if tile_h != H and (tile_h * W) % 8 != 0:   # keep sublane-aligned tiles
        tile_h = H
    return tile_h


# ----------------------------------------------------------------------------
# Forward
# ----------------------------------------------------------------------------
def point_pose_net_forward(image_nchw, params, num_keypoints, *, row_tile=512):
    """Pallas forward.  image_nchw: (B, C, H, W) float32.

    Returns (B, num_keypoints, 2) keypoint coordinates normalized by the
    spatial size H, matching the module's `result = [r / shape]` with
    shape = image[0].shape[1].  (Both x and y are divided by H, as in the
    original scalar division.)
    """
    B, C, H, W = image_nchw.shape
    hid = params["w1"].shape[1]
    K = num_keypoints
    HIDP = _round_up(hid, 128)     # lane-pad hidden dim for the MXU
    KP = _round_up(K, 128)         # lane-dense output / store path

    # NCHW -> NHWC, im2col patches, bf16 MXU operand (halves DMA bytes)
    x_nhwc = jnp.transpose(image_nchw, (0, 2, 3, 1))
    patches = _im2col_3x3(x_nhwc).astype(jnp.bfloat16)           # (B, H*W, 9C)

    # zero-padded weights: padded hidden units / keypoints contribute exactly 0
    w1p = _pad2(params["w1"].astype(jnp.bfloat16), (9 * C, HIDP))
    b1p = _pad2(params["b1"].astype(jnp.float32), (1, HIDP))
    w2p = _pad2(params["w2"].astype(jnp.bfloat16), (HIDP, KP))
    b2p = _pad2(params["b2"].astype(jnp.float32), (1, KP))

    # exact pixel coordinates (int32 -> f32), streamed per row tile
    idx = jnp.arange(H * W, dtype=jnp.int32)
    coords = jnp.stack([(idx % W).astype(jnp.float32),
                        (idx // W).astype(jnp.float32)], axis=-1)  # (H*W, 2)

    tile_h = _pick_tile_h(H, W, row_tile)
    tile_hw = tile_h * W
    n_tiles = H // tile_h

    kernel = functools.partial(_pose_fused_kernel, inv_norm=1.0 / float(H))

    cost = pl.CostEstimate(
        flops=2 * B * H * W * (9 * C * HIDP + HIDP * KP),
        transcendentals=B * H * W * KP,
        bytes_accessed=(patches.size * 2 + coords.size * 4 * B
                        + (w1p.size + w2p.size) * 2 * B * n_tiles
                        + (b1p.size + b2p.size) * 4 * B * n_tiles
                        + B * 2 * KP * 4),
    )

    out = pl.pallas_call(
        kernel,
        out_shape=jax.ShapeDtypeStruct((B, 2, KP), jnp.float32),
        grid_spec=pltpu.PrefetchScalarGridSpec(
            num_scalar_prefetch=0,
            grid=(B, n_tiles),
            in_specs=[
                pl.BlockSpec((None, tile_hw, 9 * C), lambda b, t: (b, t, 0)),
                pl.BlockSpec((tile_hw, 2), lambda b, t: (t, 0)),
                pl.BlockSpec((9 * C, HIDP), lambda b, t: (0, 0)),
                pl.BlockSpec((1, HIDP), lambda b, t: (0, 0)),
                pl.BlockSpec((HIDP, KP), lambda b, t: (0, 0)),
                pl.BlockSpec((1, KP), lambda b, t: (0, 0)),
            ],
            out_specs=pl.BlockSpec((None, 2, KP), lambda b, t: (b, 0, 0)),
            scratch_shapes=[pltpu.VMEM((1, KP), jnp.float32)] * 4,
        ),
        compiler_params=pltpu.CompilerParams(
            dimension_semantics=("parallel", "arbitrary"),
            vmem_limit_bytes=32 * 1024 * 1024,
        ),
        cost_estimate=cost,
    )(patches, coords, w1p, b1p, w2p, b2p)

    return jnp.transpose(out[:, :, :K], (0, 2, 1))               # (B, K, 2)


# ----------------------------------------------------------------------------
# Pure-JAX reference (same bf16 operand rounding) for correctness checking
# ----------------------------------------------------------------------------
def _reference_forward(image_nchw, params, K):
    B, C, H, W = image_nchw.shape
    x_nhwc = jnp.transpose(image_nchw, (0, 2, 3, 1))
    patches = _im2col_3x3(x_nhwc).astype(jnp.bfloat16).astype(jnp.float32)
    w1 = params["w1"].astype(jnp.bfloat16).astype(jnp.float32)
    w2 = params["w2"].astype(jnp.bfloat16).astype(jnp.float32)
    h = jnp.maximum(jnp.einsum("bpc,cn->bpn", patches, w1) + params["b1"], 0.0)
    h = h.astype(jnp.bfloat16).astype(jnp.float32)
    hm = jnp.einsum("bpn,nk->bpk", h, w2) + params["b2"]         # (B, H*W, K)
    p = jax.nn.softmax(hm, axis=1)
    idx = jnp.arange(H * W, dtype=jnp.int32)
    xs = (idx % W).astype(jnp.float32)[None, :, None]
    ys = (idx // W).astype(jnp.float32)[None, :, None]
    ex = jnp.sum(p * xs, axis=1)
    ey = jnp.sum(p * ys, axis=1)
    return jnp.stack([ex, ey], axis=-1) / float(H)               # (B, K, 2)


def init_params(key, in_channels, hidden, num_keypoints):
    k1, k2, k3, k4 = jax.random.split(key, 4)
    return {
        "w1": 0.05 * jax.random.normal(k1, (in_channels * 9, hidden), jnp.float32),
        "b1": 0.01 * jax.random.normal(k2, (1, hidden), jnp.float32),
        "w2": 0.05 * jax.random.normal(k3, (hidden, num_keypoints), jnp.float32),
        "b2": 0.01 * jax.random.normal(k4, (1, num_keypoints), jnp.float32),
    }


if __name__ == "__main__":
    B, C, H, W = 2, 4, 16, 16
    HIDDEN = 32
    NUM_KEYPOINTS = 8

    key = jax.random.PRNGKey(0)
    k_img, k_par = jax.random.split(key)
    image = jax.random.normal(k_img, (B, C, H, W), jnp.float32)   # NCHW input
    params = init_params(k_par, C, HIDDEN, NUM_KEYPOINTS)

    # row_tile=128 -> tile_h=8, 2 row tiles per image: exercises the online
    # soft-argmax accumulation path across tiles.
    out = point_pose_net_forward(image, params, NUM_KEYPOINTS, row_tile=128)
    out = jax.block_until_ready(out)

    ref = _reference_forward(image, params, NUM_KEYPOINTS)

    assert out.shape == (B, NUM_KEYPOINTS, 2)
    assert bool(jnp.all(jnp.isfinite(out)))
    # coordinates are normalized by the spatial size -> lie in [0, 1)
    assert bool(jnp.all(out >= 0.0)) and bool(jnp.all(out < 1.0))
    assert bool(jnp.allclose(out, ref, atol=2e-2, rtol=2e-2))
    print("KERNEL_OK")
</pallas_src>

<mosaic_0001>
module attributes {stable_mosaic.version = 11 : i64} {
  func.func @_pose_fused_kernel(%arg0: i32, %arg1: i32, %arg2: memref<1x128x36xbf16, #tpu.memory_space<vmem>>, %arg3: memref<128x2xf32, #tpu.memory_space<vmem>>, %arg4: memref<36x128xbf16, #tpu.memory_space<vmem>>, %arg5: memref<1x128xf32, #tpu.memory_space<vmem>>, %arg6: memref<128x128xbf16, #tpu.memory_space<vmem>>, %arg7: memref<1x128xf32, #tpu.memory_space<vmem>>, %arg8: memref<1x2x128xf32, #tpu.memory_space<vmem>>, %arg9: memref<1x128xf32, #tpu.memory_space<vmem>>, %arg10: memref<1x128xf32, #tpu.memory_space<vmem>>, %arg11: memref<1x128xf32, #tpu.memory_space<vmem>>, %arg12: memref<1x128xf32, #tpu.memory_space<vmem>>) attributes {dimension_semantics = [#tpu.dimension_semantics<parallel>, #tpu.dimension_semantics<arbitrary>], iteration_bounds = array<i64: 2, 2>, scalar_prefetch = 0 : i64, scratch_operands = 4 : i64, tpu.core_type = #tpu.core_type<tc>, window_params = [{transform_indices = @transform_0, window_bounds = array<i64: 1, 128, 36>}, {transform_indices = @transform_1, window_bounds = array<i64: 128, 2>}, {pipeline_mode = #tpu.pipeline_mode<synchronous>, transform_indices = @transform_2, window_bounds = array<i64: 36, 128>}, {pipeline_mode = #tpu.pipeline_mode<synchronous>, transform_indices = @transform_3, window_bounds = array<i64: 1, 128>}, {pipeline_mode = #tpu.pipeline_mode<synchronous>, transform_indices = @transform_4, window_bounds = array<i64: 128, 128>}, {pipeline_mode = #tpu.pipeline_mode<synchronous>, transform_indices = @transform_5, window_bounds = array<i64: 1, 128>}, {transform_indices = @transform_6, window_bounds = array<i64: 1, 2, 128>}]} {
    %c0_i32 = arith.constant 0 : i32
    %0 = arith.cmpi eq, %arg1, %c0_i32 : i32
    %1 = arith.extui %0 : i1 to i32
    %c0_i32_0 = arith.constant 0 : i32
    %2 = arith.cmpi ne, %1, %c0_i32_0 : i32
    scf.if %2 {
      %cst_38 = arith.constant 0xFF800000 : f32
      %57 = vector.broadcast %cst_38 : f32 to vector<1x128xf32>
      %c0_39 = arith.constant 0 : index
      %c0_40 = arith.constant 0 : index
      %58 = vector.load %arg9[%c0_39, %c0_40] : memref<1x128xf32, #tpu.memory_space<vmem>>, vector<1x128xf32>
      tpu.vector_store %arg9[%c0_39, %c0_40], %57 {strides = array<i32>} : memref<1x128xf32, #tpu.memory_space<vmem>>, vector<1x128xf32>,
      %cst_41 = arith.constant 0.000000e+00 : f32
      %59 = vector.broadcast %cst_41 : f32 to vector<1x128xf32>
      %c0_42 = arith.constant 0 : index
      %c0_43 = arith.constant 0 : index
      %60 = vector.load %arg10[%c0_42, %c0_43] : memref<1x128xf32, #tpu.memory_space<vmem>>, vector<1x128xf32>
      tpu.vector_store %arg10[%c0_42, %c0_43], %59 {strides = array<i32>} : memref<1x128xf32, #tpu.memory_space<vmem>>, vector<1x128xf32>,
      %cst_44 = arith.constant 0.000000e+00 : f32
      %61 = vector.broadcast %cst_44 : f32 to vector<1x128xf32>
      %c0_45 = arith.constant 0 : index
      %c0_46 = arith.constant 0 : index
      %62 = vector.load %arg11[%c0_45, %c0_46] : memref<1x128xf32, #tpu.memory_space<vmem>>, vector<1x128xf32>
      tpu.vector_store %arg11[%c0_45, %c0_46], %61 {strides = array<i32>} : memref<1x128xf32, #tpu.memory_space<vmem>>, vector<1x128xf32>,
      %cst_47 = arith.constant 0.000000e+00 : f32
      %63 = vector.broadcast %cst_47 : f32 to vector<1x128xf32>
      %c0_48 = arith.constant 0 : index
      %c0_49 = arith.constant 0 : index
      %64 = vector.load %arg12[%c0_48, %c0_49] : memref<1x128xf32, #tpu.memory_space<vmem>>, vector<1x128xf32>
      tpu.vector_store %arg12[%c0_48, %c0_49], %63 {strides = array<i32>} : memref<1x128xf32, #tpu.memory_space<vmem>>, vector<1x128xf32>,
    } else {
    }
    %c0 = arith.constant 0 : index
    %c0_1 = arith.constant 0 : index
    %c0_2 = arith.constant 0 : index
    %3 = vector.load %arg2[%c0, %c0_1, %c0_2] : memref<1x128x36xbf16, #tpu.memory_space<vmem>>, vector<1x128x36xbf16>
    %4 = vector.shape_cast %3 : vector<1x128x36xbf16> to vector<128x36xbf16>
    %c0_3 = arith.constant 0 : index
    %c0_4 = arith.constant 0 : index
    %5 = vector.load %arg4[%c0_3, %c0_4] : memref<36x128xbf16, #tpu.memory_space<vmem>>, vector<36x128xbf16>
    %cst = arith.constant dense<0.000000e+00> : vector<128x128xf32>
    %6 = tpu.matmul %4, %5, %cst {dimension_numbers = #tpu.dot_dimension_numbers<[1], [0], [0], [1], [0, 0, 1, 1], [], []>} : vector<128x36xbf16>, vector<36x128xbf16>, vector<128x128xf32> -> vector<128x128xf32>
    %c0_5 = arith.constant 0 : index
    %c0_6 = arith.constant 0 : index
    %7 = vector.load %arg5[%c0_5, %c0_6] : memref<1x128xf32, #tpu.memory_space<vmem>>, vector<1x128xf32>
    %8 = vector.broadcast %7 : vector<1x128xf32> to vector<128x128xf32>
    %9 = arith.addf %6, %8 : vector<128x128xf32>
    %cst_7 = arith.constant 0.000000e+00 : f32
    %10 = vector.broadcast %cst_7 : f32 to vector<128x128xf32>
    %11 = arith.maximumf %9, %10 : vector<128x128xf32>
    %12 = arith.truncf %11 : vector<128x128xf32> to vector<128x128xbf16>
    %c0_8 = arith.constant 0 : index
    %c0_9 = arith.constant 0 : index
    %13 = vector.load %arg6[%c0_8, %c0_9] : memref<128x128xbf16, #tpu.memory_space<vmem>>, vector<128x128xbf16>
    %cst_10 = arith.constant dense<0.000000e+00> : vector<128x128xf32>
    %14 = tpu.matmul %12, %13, %cst_10 {dimension_numbers = #tpu.dot_dimension_numbers<[1], [0], [0], [1], [0, 0, 1, 1], [], []>} : vector<128x128xbf16>, vector<128x128xbf16>, vector<128x128xf32> -> vector<128x128xf32>
    %c0_11 = arith.constant 0 : index
    %c0_12 = arith.constant 0 : index
    %15 = vector.load %arg7[%c0_11, %c0_12] : memref<1x128xf32, #tpu.memory_space<vmem>>, vector<1x128xf32>
    %16 = vector.broadcast %15 : vector<1x128xf32> to vector<128x128xf32>
    %17 = arith.addf %14, %16 : vector<128x128xf32>
    %c0_13 = arith.constant 0 : index
    %c0_14 = arith.constant 0 : index
    %18 = vector.load %arg3[%c0_13, %c0_14] : memref<128x2xf32, #tpu.memory_space<vmem>>, vector<128x2xf32>
    %19 = vector.extract_strided_slice %18 {offsets = [0, 0], sizes = [128, 1], strides = [1, 1]} : vector<128x2xf32> to vector<128x1xf32>
    %20 = vector.extract_strided_slice %18 {offsets = [0, 1], sizes = [128, 1], strides = [1, 1]} : vector<128x2xf32> to vector<128x1xf32>
    %cst_15 = arith.constant dense<0xFF800000> : vector<128xf32>
    %21 = vector.multi_reduction <maximumf>, %17, %cst_15 [0] : vector<128x128xf32> to vector<128xf32>
    %22 = vector.shape_cast %21 : vector<128xf32> to vector<1x128xf32>
    %c0_16 = arith.constant 0 : index
    %c0_17 = arith.constant 0 : index
    %23 = vector.load %arg9[%c0_16, %c0_17] : memref<1x128xf32, #tpu.memory_space<vmem>>, vector<1x128xf32>
    %24 = arith.maximumf %23, %22 : vector<1x128xf32>
    %c0_18 = arith.constant 0 : index
    %c0_19 = arith.constant 0 : index
    %25 = vector.load %arg9[%c0_18, %c0_19] : memref<1x128xf32, #tpu.memory_space<vmem>>, vector<1x128xf32>
    %26 = arith.subf %25, %24 : vector<1x128xf32>
    %27 = math.exp %26 : vector<1x128xf32>
    %28 = vector.broadcast %24 : vector<1x128xf32> to vector<128x128xf32>
    %29 = arith.subf %17, %28 : vector<128x128xf32>
    %30 = math.exp %29 : vector<128x128xf32>
    %c0_20 = arith.constant 0 : index
    %c0_21 = arith.constant 0 : index
    %31 = vector.load %arg10[%c0_20, %c0_21] : memref<1x128xf32, #tpu.memory_space<vmem>>, vector<1x128xf32>
    %32 = arith.mulf %27, %31 : vector<1x128xf32>
    %cst_22 = arith.constant dense<0.000000e+00> : vector<128xf32>
    %33 = vector.multi_reduction <add>, %30, %cst_22 [0] : vector<128x128xf32> to vector<128xf32>
    %34 = vector.shape_cast %33 : vector<128xf32> to vector<1x128xf32>
    %35 = arith.addf %32, %34 : vector<1x128xf32>
    %c0_23 = arith.constant 0 : index
    %c0_24 = arith.constant 0 : index
    %36 = vector.load %arg10[%c0_23, %c0_24] : memref<1x128xf32, #tpu.memory_space<vmem>>, vector<1x128xf32>
    tpu.vector_store %arg10[%c0_23, %c0_24], %35 {strides = array<i32>} : memref<1x128xf32, #tpu.memory_space<vmem>>, vector<1x128xf32>,
    %c0_25 = arith.constant 0 : index
    %c0_26 = arith.constant 0 : index
    %37 = vector.load %arg11[%c0_25, %c0_26] : memref<1x128xf32, #tpu.memory_space<vmem>>, vector<1x128xf32>
    %38 = arith.mulf %27, %37 : vector<1x128xf32>
    %39 = vector.broadcast %19 : vector<128x1xf32> to vector<128x128xf32>
    %40 = arith.mulf %30, %39 : vector<128x128xf32>
    %cst_27 = arith.constant dense<0.000000e+00> : vector<128xf32>
    %41 = vector.multi_reduction <add>, %40, %cst_27 [0] : vector<128x128xf32> to vector<128xf32>
    %42 = vector.shape_cast %41 : vector<128xf32> to vector<1x128xf32>
    %43 = arith.addf %38, %42 : vector<1x128xf32>
    %c0_28 = arith.constant 0 : index
    %c0_29 = arith.constant 0 : index
    %44 = vector.load %arg11[%c0_28, %c0_29] : memref<1x128xf32, #tpu.memory_space<vmem>>, vector<1x128xf32>
    tpu.vector_store %arg11[%c0_28, %c0_29], %43 {strides = array<i32>} : memref<1x128xf32, #tpu.memory_space<vmem>>, vector<1x128xf32>,
    %c0_30 = arith.constant 0 : index
    %c0_31 = arith.constant 0 : index
    %45 = vector.load %arg12[%c0_30, %c0_31] : memref<1x128xf32, #tpu.memory_space<vmem>>, vector<1x128xf32>
    %46 = arith.mulf %27, %45 : vector<1x128xf32>
    %47 = vector.broadcast %20 : vector<128x1xf32> to vector<128x128xf32>
    %48 = arith.mulf %30, %47 : vector<128x128xf32>
    %cst_32 = arith.constant dense<0.000000e+00> : vector<128xf32>
    %49 = vector.multi_reduction <add>, %48, %cst_32 [0] : vector<128x128xf32> to vector<128xf32>
    %50 = vector.shape_cast %49 : vector<128xf32> to vector<1x128xf32>
    %51 = arith.addf %46, %50 : vector<1x128xf32>
    %c0_33 = arith.constant 0 : index
    %c0_34 = arith.constant 0 : index
    %52 = vector.load %arg12[%c0_33, %c0_34] : memref<1x128xf32, #tpu.memory_space<vmem>>, vector<1x128xf32>
    tpu.vector_store %arg12[%c0_33, %c0_34], %51 {strides = array<i32>} : memref<1x128xf32, #tpu.memory_space<vmem>>, vector<1x128xf32>,
    %c0_35 = arith.constant 0 : index
    %c0_36 = arith.constant 0 : index
    %53 = vector.load %arg9[%c0_35, %c0_36] : memref<1x128xf32, #tpu.memory_space<vmem>>, vector<1x128xf32>
    tpu.vector_store %arg9[%c0_35, %c0_36], %24 {strides = array<i32>} : memref<1x128xf32, #tpu.memory_space<vmem>>, vector<1x128xf32>,
    %c1_i32 = arith.constant 1 : i32
    %54 = arith.cmpi eq, %arg1, %c1_i32 : i32
    %55 = arith.extui %54 : i1 to i32
    %c0_i32_37 = arith.constant 0 : i32
    %56 = arith.cmpi ne, %55, %c0_i32_37 : i32
    scf.if %56 {
      %c0_38 = arith.constant 0 : index
      %c0_39 = arith.constant 0 : index
      %57 = vector.load %arg10[%c0_38, %c0_39] : memref<1x128xf32, #tpu.memory_space<vmem>>, vector<1x128xf32>
      %58 = tpu.reciprocal %57 {approx = true} : vector<1x128xf32> -> vector<1x128xf32>
      %c0_40 = arith.constant 0 : index
      %c0_41 = arith.constant 0 : index
      %59 = vector.load %arg11[%c0_40, %c0_41] : memref<1x128xf32, #tpu.memory_space<vmem>>, vector<1x128xf32>
      %60 = arith.mulf %59, %58 : vector<1x128xf32>
      %cst_42 = arith.constant 6.250000e-02 : f32
      %61 = vector.broadcast %cst_42 : f32 to vector<1x128xf32>
      %62 = arith.mulf %60, %61 : vector<1x128xf32>
      %c0_43 = arith.constant 0 : index
      %c0_44 = arith.constant 0 : index
      %63 = vector.load %arg12[%c0_43, %c0_44] : memref<1x128xf32, #tpu.memory_space<vmem>>, vector<1x128xf32>
      %64 = arith.mulf %63, %58 : vector<1x128xf32>
      %cst_45 = arith.constant 6.250000e-02 : f32
      %65 = vector.broadcast %cst_45 : f32 to vector<1x128xf32>
      %66 = arith.mulf %64, %65 : vector<1x128xf32>
      %67 = tpu.concatenate %62, %66 in 0 : vector<1x128xf32>, vector<1x128xf32> -> vector<2x128xf32>
      %c0_46 = arith.constant 0 : index
      %c0_47 = arith.constant 0 : index
      %c0_48 = arith.constant 0 : index
      %68 = vector.load %arg8[%c0_46, %c0_47, %c0_48] : memref<1x2x128xf32, #tpu.memory_space<vmem>>, vector<1x2x128xf32>
      %69 = vector.shape_cast %68 : vector<1x2x128xf32> to vector<2x128xf32>
      %70 = vector.shape_cast %67 : vector<2x128xf32> to vector<1x2x128xf32>
      tpu.vector_store %arg8[%c0_46, %c0_47, %c0_48], %70 {strides = array<i32>} : memref<1x2x128xf32, #tpu.memory_space<vmem>>, vector<1x2x128xf32>,
    } else {
    }
    return
  }
  func.func @transform_0(%arg0: i32, %arg1: i32) -> (i32, i32, i32) {
    %c0_i32 = arith.constant 0 : i32
    %c0_i32_0 = arith.constant 0 : i32
    return %arg0, %arg1, %c0_i32 : i32, i32, i32
  }
  func.func @transform_1(%arg0: i32, %arg1: i32) -> (i32, i32) {
    %c0_i32 = arith.constant 0 : i32
    %c0_i32_0 = arith.constant 0 : i32
    return %arg1, %c0_i32 : i32, i32
  }
  func.func @transform_2(%arg0: i32, %arg1: i32) -> (i32, i32) {
    %c0_i32 = arith.constant 0 : i32
    %c0_i32_0 = arith.constant 0 : i32
    %c0_i32_1 = arith.constant 0 : i32
    return %c0_i32, %c0_i32_0 : i32, i32
  }
  func.func @transform_3(%arg0: i32, %arg1: i32) -> (i32, i32) {
    %c0_i32 = arith.constant 0 : i32
    %c0_i32_0 = arith.constant 0 : i32
    %c0_i32_1 = arith.constant 0 : i32
    return %c0_i32, %c0_i32_0 : i32, i32
  }
  func.func @transform_4(%arg0: i32, %arg1: i32) -> (i32, i32) {
    %c0_i32 = arith.constant 0 : i32
    %c0_i32_0 = arith.constant 0 : i32
    %c0_i32_1 = arith.constant 0 : i32
    return %c0_i32, %c0_i32_0 : i32, i32
  }
  func.func @transform_5(%arg0: i32, %arg1: i32) -> (i32, i32) {
    %c0_i32 = arith.constant 0 : i32
    %c0_i32_0 = arith.constant 0 : i32
    %c0_i32_1 = arith.constant 0 : i32
    return %c0_i32, %c0_i32_0 : i32, i32
  }
  func.func @transform_6(%arg0: i32, %arg1: i32) -> (i32, i32, i32) {
    %c0_i32 = arith.constant 0 : i32
    %c0_i32_0 = arith.constant 0 : i32
    %c0_i32_1 = arith.constant 0 : i32
    return %arg0, %c0_i32, %c0_i32_0 : i32, i32, i32
  }
}

</mosaic_0001>

<llo_original>
// kernel: tpu_custom_call.1
$region0: #{tpu_custom_call.1}
  #allocation0 [shape = 'u32[]', space=smem, size = 0x4, offset = 0x4, fixed_abs, tag = 'smem constant byte address 0x4 - core index']
  #allocation1 [shape = 'u32[144,128]{1,0:T(1,128)}', space=vmem, size = 0x12000, scoped, tag = 'internal scratch']
  #allocation2 [shape = 'f32[1,128]{1,0:T(1,128)}', space=vmem, size = 0x200, scoped, tag = 'scratch operand']
  #allocation3 [shape = 'f32[1,128]{1,0:T(1,128)}', space=vmem, size = 0x200, scoped, tag = 'scratch operand']
  #allocation4 [shape = 'f32[1,128]{1,0:T(1,128)}', space=vmem, size = 0x200, scoped, tag = 'scratch operand']
  #allocation5 [shape = 'f32[1,128]{1,0:T(1,128)}', space=vmem, size = 0x200, scoped, tag = 'scratch operand']
  %s0 = inlined_call_operand.vmem [shape: bf16[2,256,36], index: 0, kind: input, shape index: {}]
  %s1 = inlined_call_operand.vmem [shape: f32[256,2], index: 1, kind: input, shape index: {}]
  %s2 = inlined_call_operand.vmem [shape: bf16[36,128], index: 2, kind: input, shape index: {}]
  %s3 = inlined_call_operand.vmem [shape: f32[1,128], index: 3, kind: input, shape index: {}]
  %s4 = inlined_call_operand.vmem [shape: bf16[128,128], index: 4, kind: input, shape index: {}]
  %s5 = inlined_call_operand.vmem [shape: f32[1,128], index: 5, kind: input, shape index: {}]
  %s6 = inlined_call_operand.hbm [shape: f32[2,2,128], index: 6, kind: output, shape index: {}]
  %s7 = sld [smem:[#allocation0]]
  $region65: #{tpu_custom_call.1} parent=0
    _
  %s9 = ssub.s32 1, %s7
  %s10 = scalar_select 0, %s9, %s7
  $region1: #{tpu_custom_call.1} parent=0
    #allocation6 [shape = 'u8[2048]{0}', space=vmem, size = 0x800, scoped, tag = 'output window, operand 0']
    #allocation7 [shape = 's32[2]{0}', space=sflag, size = 0x8, scoped, tag = 'scoped memory for tpu_custom_call.1']
    %11 = vsyncpa [#allocation7], 0
    %s12 = scalar_lea.sflag [#allocation7], 1
    %13 = vsyncpa %s12, 0
    loop: start=0, step=1, limit=6
    $region2: #{tpu_custom_call.1} parent=1 // loop_pre_header
      _
    $region3: #{tpu_custom_call.1} parent=1 // loop_header
      %s15 = sphi 0, %s19
      %p16 = scmp.ge.s32.totalorder %s15, 6
      %s22 = sphi 0, %s34
      %s23 = sphi 0, %s30
      %s24 = sphi 0, %s22
      %s25 = sphi 0, %s23
      %s26 = sphi 0, %s24
      %s27 = sphi 0, %s25
      %s39 = sphi 0, %s41
      %s42 = sphi 0, %s39
      %s43 = sphi 0, %s42
      %s59 = sphi 0, %s43
      %s65 = sphi 0, %s67
      %s68 = sphi 0, %s65
      %s69 = sphi 0, %s68
      %s85 = sphi 0, %s69
      %s89 = sphi 0, %s89
      %s91 = sphi 0, %s89
      %s92 = sphi 0, %s91
      %s106 = sphi 0, %s92
      %s110 = sphi 0, %s110
      %s112 = sphi 0, %s110
      %s113 = sphi 0, %s112
      %s127 = sphi 0, %s113
      %s131 = sphi 0, %s131
      %s133 = sphi 0, %s131
      %s134 = sphi 0, %s133
      %s148 = sphi 0, %s134
      %s152 = sphi 0, %s152
      %s154 = sphi 0, %s152
      %s155 = sphi 0, %s154
      %s169 = sphi 0, %s155
      %s175 = sphi 0, %s177
      %s178 = sphi 0, %s175
      %s179 = sphi 0, %s178
      %s195 = sphi 0, %s179
    $region4: #{tpu_custom_call.1} parent=1 // loop_header_branch
      %18 = sbr.rel (%p16) target = $region8
    $region5: #{tpu_custom_call.1} parent=1 // loop_body
      %s20 = ssub.s32 %s15, 1
      %s21 = ssub.s32 %s15, 2
      %s28 = sadd.s32 1, %s23
      %p29 = scmp.ge.s32.totalorder %s28, 2
      %s30 = scalar_select %p29, 0, %s28
      %s31 = sadd.s32 1, %s22
      %s32 = scalar_select %p29, %s31, %s22
      %p33 = scmp.ge.s32.totalorder %s32, 2
      %s34 = scalar_select %p33, 0, %s32
      %s35 = ssub.s32 %s22, %s34
      %s36 = ssub.s32 %s23, %s30
      %s37 = sor.u32 %s35, %s36
      %p38 = scmp.eq.s32.totalorder %s37, 0
      %s40 = sadd.s32 %s39, 1
      %s41 = scalar_select %p38, %s39, %s40
      %p44 = pneg %p38
      %p45 = scmp.eq.s32.totalorder %s15, 3
      %p46 = por %p44, %p45
      %p47 = scmp.ne.s32.totalorder %s39, %s42
      %p48 = scmp.eq.s32.totalorder %s15, 0
      %p49 = por %p47, %p48
      %p50 = scmp.ne.s32.totalorder %s39, %s42
      %p51 = scmp.eq.s32.totalorder %s20, 3
      %p52 = por %p50, %p51
      %p53 = scmp.ne.s32.totalorder %s42, %s43
      %p54 = scmp.eq.s32.totalorder %s20, 0
      %p55 = por %p53, %p54
      %p56 = scmp.ne.s32.totalorder %s42, %s43
      %p57 = scmp.eq.s32.totalorder %s21, 3
      %p58 = por %p56, %p57
      %p60 = scmp.ne.s32.totalorder %s43, %s59
      %p61 = scmp.eq.s32.totalorder %s21, 0
      %p62 = por %p60, %p61
      %s63 = ssub.s32 %s23, %s30
      %p64 = scmp.eq.s32.totalorder %s63, 0
      %s66 = sadd.s32 %s65, 1
      %s67 = scalar_select %p64, %s65, %s66
      %p70 = pneg %p64
      %p71 = scmp.eq.s32.totalorder %s15, 3
      %p72 = por %p70, %p71
      %p73 = scmp.ne.s32.totalorder %s65, %s68
      %p74 = scmp.eq.s32.totalorder %s15, 0
      %p75 = por %p73, %p74
      %p76 = scmp.ne.s32.totalorder %s65, %s68
      %p77 = scmp.eq.s32.totalorder %s20, 3
      %p78 = por %p76, %p77
      %p79 = scmp.ne.s32.totalorder %s68, %s69
      %p80 = scmp.eq.s32.totalorder %s20, 0
      %p81 = por %p79, %p80
      %p82 = scmp.ne.s32.totalorder %s68, %s69
      %p83 = scmp.eq.s32.totalorder %s21, 3
      %p84 = por %p82, %p83
      %p86 = scmp.ne.s32.totalorder %s69, %s85
      %p87 = scmp.eq.s32.totalorder %s21, 0
      %p88 = por %p86, %p87
      %s90 = sadd.s32 %s89, 1
      %p93 = scmp.eq.s32.totalorder %s15, 3
      %p94 = scmp.ne.s32.totalorder %s89, %s91
      %p95 = scmp.eq.s32.totalorder %s15, 0
      %p96 = por %p94, %p95
      %p97 = scmp.ne.s32.totalorder %s89, %s91
      %p98 = scmp.eq.s32.totalorder %s20, 3
      %p99 = por %p97, %p98
      %p100 = scmp.ne.s32.totalorder %s91, %s92
      %p101 = scmp.eq.s32.totalorder %s20, 0
      %p102 = por %p100, %p101
      %p103 = scmp.ne.s32.totalorder %s91, %s92
      %p104 = scmp.eq.s32.totalorder %s21, 3
      %p105 = por %p103, %p104
      %p107 = scmp.ne.s32.totalorder %s92, %s106
      %p108 = scmp.eq.s32.totalorder %s21, 0
      %p109 = por %p107, %p108
      %s111 = sadd.s32 %s110, 1
      %p114 = scmp.eq.s32.totalorder %s15, 3
      %p115 = scmp.ne.s32.totalorder %s110, %s112
      %p116 = scmp.eq.s32.totalorder %s15, 0
      %p117 = por %p115, %p116
      %p118 = scmp.ne.s32.totalorder %s110, %s112
      %p119 = scmp.eq.s32.totalorder %s20, 3
      %p120 = por %p118, %p119
      %p121 = scmp.ne.s32.totalorder %s112, %s113
      %p122 = scmp.eq.s32.totalorder %s20, 0
      %p123 = por %p121, %p122
      %p124 = scmp.ne.s32.totalorder %s112, %s113
      %p125 = scmp.eq.s32.totalorder %s21, 3
      %p126 = por %p124, %p125
      %p128 = scmp.ne.s32.totalorder %s113, %s127
      %p129 = scmp.eq.s32.totalorder %s21, 0
      %p130 = por %p128, %p129
      %s132 = sadd.s32 %s131, 1
      %p135 = scmp.eq.s32.totalorder %s15, 3
      %p136 = scmp.ne.s32.totalorder %s131, %s133
      %p137 = scmp.eq.s32.totalorder %s15, 0
      %p138 = por %p136, %p137
      %p139 = scmp.ne.s32.totalorder %s131, %s133
      %p140 = scmp.eq.s32.totalorder %s20, 3
      %p141 = por %p139, %p140
      %p142 = scmp.ne.s32.totalorder %s133, %s134
      %p143 = scmp.eq.s32.totalorder %s20, 0
      %p144 = por %p142, %p143
      %p145 = scmp.ne.s32.totalorder %s133, %s134
      %p146 = scmp.eq.s32.totalorder %s21, 3
      %p147 = por %p145, %p146
      %p149 = scmp.ne.s32.totalorder %s134, %s148
      %p150 = scmp.eq.s32.totalorder %s21, 0
      %p151 = por %p149, %p150
      %s153 = sadd.s32 %s152, 1
      %p156 = scmp.eq.s32.totalorder %s15, 3
      %p157 = scmp.ne.s32.totalorder %s152, %s154
      %p158 = scmp.eq.s32.totalorder %s15, 0
      %p159 = por %p157, %p158
      %p160 = scmp.ne.s32.totalorder %s152, %s154
      %p161 = scmp.eq.s32.totalorder %s20, 3
      %p162 = por %p160, %p161
      %p163 = scmp.ne.s32.totalorder %s154, %s155
      %p164 = scmp.eq.s32.totalorder %s20, 0
      %p165 = por %p163, %p164
      %p166 = scmp.ne.s32.totalorder %s154, %s155
      %p167 = scmp.eq.s32.totalorder %s21, 3
      %p168 = por %p166, %p167
      %p170 = scmp.ne.s32.totalorder %s155, %s169
      %p171 = scmp.eq.s32.totalorder %s21, 0
      %p172 = por %p170, %p171
      %s173 = ssub.s32 %s22, %s34
      %p174 = scmp.eq.s32.totalorder %s173, 0
      %s176 = sadd.s32 %s175, 1
      %s177 = scalar_select %p174, %s175, %s176
      %p180 = pneg %p174
      %p181 = scmp.eq.s32.totalorder %s15, 3
      %p182 = por %p180, %p181
      %p183 = scmp.ne.s32.totalorder %s175, %s178
      %p184 = scmp.eq.s32.totalorder %s15, 0
      %p185 = por %p183, %p184
      %p186 = scmp.ne.s32.totalorder %s175, %s178
      %p187 = scmp.eq.s32.totalorder %s20, 3
      %p188 = por %p186, %p187
      %p189 = scmp.ne.s32.totalorder %s178, %s179
      %p190 = scmp.eq.s32.totalorder %s20, 0
      %p191 = por %p189, %p190
      %p192 = scmp.ne.s32.totalorder %s178, %s179
      %p193 = scmp.eq.s32.totalorder %s21, 3
      %p194 = por %p192, %p193
      %p196 = scmp.ne.s32.totalorder %s179, %s195
      %p197 = scmp.eq.s32.totalorder %s21, 0
      %p198 = por %p196, %p197
      %p199 = scmp.le.s32.totalorder 1, %s15
      %p200 = scmp.lt.s32.totalorder %s15, 5
      %p201 = pnand %p199, %p200
      %p202 = pneg %p201
      // Predicated region
      $region9: #{tpu_custom_call.1} parent=5 // pred_check
        _
      $region10: #{tpu_custom_call.1} parent=5 // pred_check_branch
        %204 = sbr.rel (%p201) target = $region12
      $region11: #{tpu_custom_call.1} parent=5 // pred_region
        %s205 = ssub.s32 %s15, 1
        // Predicated region
        $region13: #{tpu_custom_call.1} parent=11 // pred_check
          %p206 = pneg %p102
        $region14: #{tpu_custom_call.1} parent=11 // pred_check_branch
          %208 = sbr.rel (%p206) target = $region16
        $region15: #{tpu_custom_call.1} parent=11 // pred_region
          _
        $region16: #{tpu_custom_call.1} parent=11 // pred_fallthru
          _
        // Predicated region
        $region17: #{tpu_custom_call.1} parent=11 // pred_check
          %p209 = pneg %p123
        $region18: #{tpu_custom_call.1} parent=11 // pred_check_branch
          %211 = sbr.rel (%p209) target = $region20
        $region19: #{tpu_custom_call.1} parent=11 // pred_region
          _
        $region20: #{tpu_custom_call.1} parent=11 // pred_fallthru
          _
        // Predicated region
        $region21: #{tpu_custom_call.1} parent=11 // pred_check
          %p212 = pneg %p144
        $region22: #{tpu_custom_call.1} parent=11 // pred_check_branch
          %214 = sbr.rel (%p212) target = $region24
        $region23: #{tpu_custom_call.1} parent=11 // pred_region
          _
        $region24: #{tpu_custom_call.1} parent=11 // pred_fallthru
          _
        // Predicated region
        $region25: #{tpu_custom_call.1} parent=11 // pred_check
          %p215 = pneg %p165
        $region26: #{tpu_custom_call.1} parent=11 // pred_check_branch
          %217 = sbr.rel (%p215) target = $region28
        $region27: #{tpu_custom_call.1} parent=11 // pred_region
          _
        $region28: #{tpu_custom_call.1} parent=11 // pred_fallthru
          _
      $region12: #{tpu_custom_call.1} parent=5 // pred_fallthru
        _
      %p218 = scmp.lt.s32.totalorder %s15, 4
      // Predicated region
      $region29: #{tpu_custom_call.1} parent=5 // pred_check
        %p219 = pneg %p218
      $region30: #{tpu_custom_call.1} parent=5 // pred_check_branch
        %221 = sbr.rel (%p219) target = $region32
      $region31: #{tpu_custom_call.1} parent=5 // pred_region
        // Predicated region
        $region33: #{tpu_custom_call.1} parent=31 // pred_check
          %p222 = pneg %p49
        $region34: #{tpu_custom_call.1} parent=31 // pred_check_branch
          %224 = sbr.rel (%p222) target = $region36
        $region35: #{tpu_custom_call.1} parent=31 // pred_region
          %s225 = smul.u32 16, %s23
          %p226 = scmp.lt.s32.totalorder %s22, 1
          %s227 = scalar_select %p226, %s22, 1
          %p228 = scmp.lt.s32.totalorder %s225, 31
          %s229 = scalar_select %p228, %s225, 31
          %s230 = smul.addr %s227, 32
          %s231 = sadd.s32 %s229, %s230
          %s232 = smul.addr %s231, 4
          %s233 = scalar_lea.vmem %s0, %s232
          %s234 = smul.u32 16, %s23
        $region36: #{tpu_custom_call.1} parent=31 // pred_fallthru
          _
        // Predicated region
        $region37: #{tpu_custom_call.1} parent=31 // pred_check
          %p235 = pneg %p75
        $region38: #{tpu_custom_call.1} parent=31 // pred_check_branch
          %237 = sbr.rel (%p235) target = $region40
        $region39: #{tpu_custom_call.1} parent=31 // pred_region
          %s238 = smul.u32 16, %s23
          %p239 = scmp.lt.s32.totalorder %s238, 31
          %s240 = scalar_select %p239, %s238, 31
          %s241 = smul.addr %s240, 8
          %s242 = scalar_lea.vmem %s1, %s241
          %s243 = smul.u32 16, %s23
        $region40: #{tpu_custom_call.1} parent=31 // pred_fallthru
          _
      $region32: #{tpu_custom_call.1} parent=5 // pred_fallthru
        _
      %p244 = scmp.le.s32.totalorder 1, %s15
      %p245 = scmp.lt.s32.totalorder %s15, 5
      %p246 = pnand %p244, %p245
      %p247 = pneg %p246
      // Predicated region
      $region41: #{tpu_custom_call.1} parent=5 // pred_check
        _
      $region42: #{tpu_custom_call.1} parent=5 // pred_check_branch
        %249 = sbr.rel (%p246) target = $region44
      $region43: #{tpu_custom_call.1} parent=5 // pred_region
        %s250 = ssub.s32 %s15, 1
        %s251 = smul.u32 16, %s25
        %p252 = scmp.lt.s32.totalorder %s24, 1
        %s253 = scalar_select %p252, %s24, 1
        %p254 = scmp.lt.s32.totalorder %s251, 31
        %s255 = scalar_select %p254, %s251, 31
        %s256 = smul.addr %s253, 32
        %s257 = sadd.s32 %s255, %s256
        %s258 = smul.addr %s257, 4
        %s259 = scalar_lea.vmem %s0, %s258
        %p260 = pneg %p55
        %p261 = pneg %p52
        %s262 = smul.u32 16, %s25
        %p263 = scmp.lt.s32.totalorder %s262, 31
        %s264 = scalar_select %p263, %s262, 31
        %s265 = smul.addr %s264, 8
        %s266 = scalar_lea.vmem %s1, %s265
        %p267 = pneg %p81
        %p268 = pneg %p78
        %p269 = pneg %p102
        %p270 = pneg %p99
        %p271 = pneg %p123
        %p272 = pneg %p120
        %p273 = pneg %p144
        %p274 = pneg %p141
        %p275 = pneg %p165
        %p276 = pneg %p162
        %p277 = pneg %p191
        %p278 = pneg %p188
        %s279 = sand.u32 %s178, 1
        %s280 = scalar_lea.sflag [#allocation7], %s279
        %s281 = sand.u32 %s178, 1
        %s282 = smul.addr %s281, 2
        %s283 = scalar_lea.vmem [#allocation6], %s282
        %s284 = smul.u32 16, %s25
        %p285 = scmp.lt.s32.totalorder %s24, 1
        %s286 = scalar_select %p285, %s24, 1
        %p287 = scmp.lt.s32.totalorder %s284, 31
        %s288 = scalar_select %p287, %s284, 31
        %s289 = smul.addr %s286, 32
        %s290 = sadd.s32 %s288, %s289
        %s291 = smul.addr %s290, 4
        %s292 = scalar_lea.vmem %s0, %s291
        %s293 = smul.u32 16, %s25
        %s294 = smul.u32 16, %s25
        %p295 = scmp.lt.s32.totalorder %s294, 31
        %s296 = scalar_select %p295, %s294, 31
        %s297 = smul.addr %s296, 8
        %s298 = scalar_lea.vmem %s1, %s297
        %s299 = smul.u32 16, %s25
        %p301 = scmp.eq.s32.totalorder %s25, 0
        // Predicated region
        $region45: #{tpu_custom_call.1} parent=43 // pred_check
          %p302 = pneg %p301
        $region46: #{tpu_custom_call.1} parent=43 // pred_check_branch
          %304 = sbr.rel (%p302) target = $region48
        $region47: #{tpu_custom_call.1} parent=43 // pred_region
          %305 = vst [vmem:[#allocation2] sm:$0x1] -inf
          %306 = vst [vmem:[#allocation3] sm:$0x1] 0.0
          %307 = vst [vmem:[#allocation4] sm:$0x1] 0.0
          %308 = vst [vmem:[#allocation5] sm:$0x1] 0.0
        $region48: #{tpu_custom_call.1} parent=43 // pred_fallthru
          _
        %v309 = vld [vmem:[%s292] sm:$0xf]
        %v310 = vld [vmem:[%s292 + $0x4] sm:$0xf]
        %v311 = vld [vmem:[%s292 + $0x8] sm:$0xf]
        %v312 = vld [vmem:[%s292 + $0xc] sm:$0xf]
        %v313 = vld [vmem:[%s292 + $0x10] sm:$0xf]
        %v314 = vld [vmem:[%s292 + $0x14] sm:$0xf]
        %v315 = vld [vmem:[%s292 + $0x18] sm:$0xf]
        %v316 = vld [vmem:[%s292 + $0x1c] sm:$0xf]
        %v317 = vld [vmem:[%s292 + $0x20] sm:$0xf]
        %v318 = vld [vmem:[%s292 + $0x24] sm:$0xf]
        %v319 = vld [vmem:[%s292 + $0x28] sm:$0xf]
        %v320 = vld [vmem:[%s292 + $0x2c] sm:$0xf]
        %v321 = vld [vmem:[%s292 + $0x30] sm:$0xf]
        %v322 = vld [vmem:[%s292 + $0x34] sm:$0xf]
        %v323 = vld [vmem:[%s292 + $0x38] sm:$0xf]
        %v324 = vld [vmem:[%s292 + $0x3c] sm:$0xf]
        %v325 = vld [vmem:[%s2] sm:$0xf]
        %v326 = vld [vmem:[%s2 + $0x4] sm:$0xf]
        %v327 = vld [vmem:[%s2 + $0x8] sm:$0xf]
        %v328 = vld [vmem:[%s2 + $0xc] sm:$0xf]
        %v329 = vld [vmem:[%s2 + $0x10] sm:$0x3]
        %v330 = vld [vmem:[%s3] sm:$0x1]
        %v332 = vlaneseq
        %v333 = vshrl.u32 %v332, 7
        %v334 = vsub.s32 0, %v333
        %v335 = vrot.slane %v330, %v334
        %v353 = vunpack.c.l.b16 %v309
        %v354 = vunpack.c.l.b16 %v310
        %v355 = vunpack.c.l.b16 %v311
        %v356 = vunpack.c.l.b16 %v312
        %v357 = vunpack.c.l.b16 %v313
        %v358 = vunpack.c.l.b16 %v314
        %v359 = vunpack.c.l.b16 %v315
        %v360 = vunpack.c.l.b16 %v316
        %v361 = vunpack.c.l.b16 %v317
        %v362 = vunpack.c.l.b16 %v318
        %v363 = vunpack.c.l.b16 %v319
        %v364 = vunpack.c.l.b16 %v320
        %v365 = vunpack.c.l.b16 %v321
        %v366 = vunpack.c.l.b16 %v322
        %v367 = vunpack.c.l.b16 %v323
        %v368 = vunpack.c.l.b16 %v324
        %v369 = vpack.c.b16 %v354, %v353
        %v370 = vpack.c.b16 %v356, %v355
        %v371 = vpack.c.b16 %v358, %v357
        %v372 = vpack.c.b16 %v360, %v359
        %v373 = vpack.c.b16 %v362, %v361
        %v374 = vpack.c.b16 %v364, %v363
        %v375 = vpack.c.b16 %v366, %v365
        %v376 = vpack.c.b16 %v368, %v367
        %v382 = vunpack.c.l.b16 %v325
        %v383 = vunpack.c.l.b16 %v326
        %v384 = vunpack.c.l.b16 %v327
        %v385 = vunpack.c.l.b16 %v328
        %v386 = vunpack.c.l.b16 %v329
        %v387 = vpack.c.b16 %v383, %v382
        %v388 = vpack.c.b16 %v385, %v384
        %v389 = vpack.c.b16 %v386, %v386
        %vm392 = vcmask 293888
        %v394 = vsel %vm392, %v369, 0
        %v397 = vsel %vm392, %v370, 0
        %v400 = vsel %vm392, %v371, 0
        %v403 = vsel %vm392, %v372, 0
        %v406 = vsel %vm392, %v373, 0
        %v409 = vsel %vm392, %v374, 0
        %v412 = vsel %vm392, %v375, 0
        %v415 = vsel %vm392, %v376, 0
        %vm417 = vcmask 1041408
        %v419 = vsel %vm417, %v389, 0
        %421 = vmatprep.subr.bf16.mxu0 0
        %422 = vmatpush1.bf16.msra.mxu0 0
        %423 = vmatprep.subr.bf16.mxu0 0
        %424 = vmatpush1.bf16.msra.mxu0 0
        %425 = vmatprep.subr.bf16.mxu0 0
        %426 = vmatpush1.bf16.msra.mxu0 0
        %427 = vmatprep.subr.bf16.mxu0 0
        %428 = vmatpush1.bf16.msra.mxu0 0
        %429 = vmatprep.subr.bf16.mxu0 0
        %430 = vmatpush1.bf16.msra.mxu0 0
        %431 = vmatprep.subr.bf16.mxu0 0
        %432 = vmatpush1.bf16.msra.mxu0 %v419
        %433 = vmatprep.subr.bf16.mxu0 0
        %434 = vmatpush1.bf16.msra.mxu0 %v388
        %435 = vmatprep.subr.bf16.mxu0 0
        %436 = vmatpush1.bf16.msra.mxu0 %v387
        %437 = vmatprep.subr.bf16.mxu0 0
        %438 = vmatpush2.bf16.msra.mxu0 0
        %439 = vmatprep.subr.bf16.mxu0 0
        %440 = vmatpush2.bf16.msra.mxu0 0
        %441 = vmatprep.subr.bf16.mxu0 0
        %442 = vmatpush2.bf16.msra.mxu0 0
        %443 = vmatprep.subr.bf16.mxu0 0
        %444 = vmatpush2.bf16.msra.mxu0 0
        %445 = vmatprep.subr.bf16.mxu0 0
        %446 = vmatpush2.bf16.msra.mxu0 0
        %447 = vmatprep.subr.bf16.mxu0 0
        %448 = vmatpush2.bf16.msra.mxu0 0
        %449 = vmatprep.subr.bf16.mxu0 0
        %450 = vmatpush2.bf16.msra.mxu0 0
        %451 = vmatprep.subr.bf16.mxu0 0
        %452 = vmatpush2.bf16.msra.mxu0 0
        %453 = vmatprep.mubr.bf16.mxu0 0
        %454 = vmatmul.mubr.bf16.gmra.mxu0 %v394
        %v455 = vpop.f32.mrf.mxu0
        %v456 = vadd.f32 %v335, %v455
        %v457 = vpop.f32.mrf.mxu0
        %v458 = vpop.f32.mrf.mxu0
        %v459 = vadd.f32 %v335, %v458
        %v460 = vpop.f32.mrf.mxu0
        %461 = vmatprep.mubr.bf16.mxu0 0
        %462 = vmatmul.mubr.bf16.gmra.mxu0 %v397
        %v463 = vpop.f32.mrf.mxu0
        %v464 = vadd.f32 %v335, %v463
        %v465 = vpop.f32.mrf.mxu0
        %v466 = vpop.f32.mrf.mxu0
        %v467 = vadd.f32 %v335, %v466
        %v468 = vpop.f32.mrf.mxu0
        %469 = vmatprep.mubr.bf16.mxu0 0
        %470 = vmatmul.mubr.bf16.gmra.mxu0 %v400
        %v471 = vpop.f32.mrf.mxu0
        %v472 = vadd.f32 %v335, %v471
        %v473 = vpop.f32.mrf.mxu0
        %v474 = vpop.f32.mrf.mxu0
        %v475 = vadd.f32 %v335, %v474
        %v476 = vpop.f32.mrf.mxu0
        %477 = vmatprep.mubr.bf16.mxu0 0
        %478 = vmatmul.mubr.bf16.gmra.mxu0 %v403
        %v479 = vpop.f32.mrf.mxu0
        %v480 = vadd.f32 %v335, %v479
        %v481 = vpop.f32.mrf.mxu0
        %v482 = vpop.f32.mrf.mxu0
        %v483 = vadd.f32 %v335, %v482
        %v484 = vpop.f32.mrf.mxu0
        %485 = vmatprep.mubr.bf16.mxu0 0
        %486 = vmatmul.mubr.bf16.gmra.mxu0 %v406
        %v487 = vpop.f32.mrf.mxu0
        %v488 = vadd.f32 %v335, %v487
        %v489 = vpop.f32.mrf.mxu0
        %v490 = vpop.f32.mrf.mxu0
        %v491 = vadd.f32 %v335, %v490
        %v492 = vpop.f32.mrf.mxu0
        %493 = vmatprep.mubr.bf16.mxu0 0
        %494 = vmatmul.mubr.bf16.gmra.mxu0 %v409
        %v495 = vpop.f32.mrf.mxu0
        %v496 = vadd.f32 %v335, %v495
        %v497 = vpop.f32.mrf.mxu0
        %v498 = vpop.f32.mrf.mxu0
        %v499 = vadd.f32 %v335, %v498
        %v500 = vpop.f32.mrf.mxu0
        %501 = vmatprep.mubr.bf16.mxu0 0
        %502 = vmatmul.mubr.bf16.gmra.mxu0 %v412
        %v503 = vpop.f32.mrf.mxu0
        %v504 = vadd.f32 %v335, %v503
        %v505 = vpop.f32.mrf.mxu0
        %v506 = vpop.f32.mrf.mxu0
        %v507 = vadd.f32 %v335, %v506
        %v508 = vpop.f32.mrf.mxu0
        %509 = vmatprep.mubr.bf16.mxu0 0
        %510 = vmatmul.mubr.bf16.gmra.mxu0 %v415
        %v511 = vpop.f32.mrf.mxu0
        %v512 = vadd.f32 %v335, %v511
        %v513 = vpop.f32.mrf.mxu0
        %v514 = vpop.f32.mrf.mxu0
        %v515 = vadd.f32 %v335, %v514
        %v516 = vpop.f32.mrf.mxu0
        %517 = vdwg.mxu0
        %v518 = vmax.f32 %v456, 0.0
        %v519 = vmax.f32 %v459, 0.0
        %v520 = vmax.f32 %v464, 0.0
        %v521 = vmax.f32 %v467, 0.0
        %v522 = vmax.f32 %v472, 0.0
        %v523 = vmax.f32 %v475, 0.0
        %v524 = vmax.f32 %v480, 0.0
        %v525 = vmax.f32 %v483, 0.0
        %v526 = vmax.f32 %v488, 0.0
        %v527 = vmax.f32 %v491, 0.0
        %v528 = vmax.f32 %v496, 0.0
        %v529 = vmax.f32 %v499, 0.0
        %v530 = vmax.f32 %v504, 0.0
        %v531 = vmax.f32 %v507, 0.0
        %v532 = vmax.f32 %v512, 0.0
        %v533 = vmax.f32 %v515, 0.0
        %v534 = vpack.c.bf16 %v519, %v518
        %v535 = vpack.c.bf16 %v521, %v520
        %v536 = vpack.c.bf16 %v523, %v522
        %v537 = vpack.c.bf16 %v525, %v524
        %v538 = vpack.c.bf16 %v527, %v526
        %v539 = vpack.c.bf16 %v529, %v528
        %v540 = vpack.c.bf16 %v531, %v530
        %v541 = vpack.c.bf16 %v533, %v532
        %v542 = vld [vmem:[%s4] sm:$0xf]
        %v543 = vld [vmem:[%s4 + $0x4] sm:$0xf]
        %v544 = vld [vmem:[%s4 + $0x8] sm:$0xf]
        %v545 = vld [vmem:[%s4 + $0xc] sm:$0xf]
        %v546 = vld [vmem:[%s4 + $0x10] sm:$0xf]
        %v547 = vld [vmem:[%s4 + $0x14] sm:$0xf]
        %v548 = vld [vmem:[%s4 + $0x18] sm:$0xf]
        %v549 = vld [vmem:[%s4 + $0x1c] sm:$0xf]
        %v550 = vld [vmem:[%s4 + $0x20] sm:$0xf]
        %v551 = vld [vmem:[%s4 + $0x24] sm:$0xf]
        %v552 = vld [vmem:[%s4 + $0x28] sm:$0xf]
        %v553 = vld [vmem:[%s4 + $0x2c] sm:$0xf]
        %v554 = vld [vmem:[%s4 + $0x30] sm:$0xf]
        %v555 = vld [vmem:[%s4 + $0x34] sm:$0xf]
        %v556 = vld [vmem:[%s4 + $0x38] sm:$0xf]
        %v557 = vld [vmem:[%s4 + $0x3c] sm:$0xf]
        %v558 = vld [vmem:[%s5] sm:$0x1]
        %v560 = vlaneseq
        %v561 = vshrl.u32 %v560, 7
        %v562 = vsub.s32 0, %v561
        %v563 = vrot.slane %v558, %v562
        %v581 = vunpack.c.l.b16 %v542
        %v582 = vunpack.c.l.b16 %v543
        %v583 = vunpack.c.l.b16 %v544
        %v584 = vunpack.c.l.b16 %v545
        %v585 = vunpack.c.l.b16 %v546
        %v586 = vunpack.c.l.b16 %v547
        %v587 = vunpack.c.l.b16 %v548
        %v588 = vunpack.c.l.b16 %v549
        %v589 = vunpack.c.l.b16 %v550
        %v590 = vunpack.c.l.b16 %v551
        %v591 = vunpack.c.l.b16 %v552
        %v592 = vunpack.c.l.b16 %v553
        %v593 = vunpack.c.l.b16 %v554
        %v594 = vunpack.c.l.b16 %v555
        %v595 = vunpack.c.l.b16 %v556
        %v596 = vunpack.c.l.b16 %v557
        %v597 = vpack.c.b16 %v582, %v581
        %v598 = vpack.c.b16 %v584, %v583
        %v599 = vpack.c.b16 %v586, %v585
        %v600 = vpack.c.b16 %v588, %v587
        %v601 = vpack.c.b16 %v590, %v589
        %v602 = vpack.c.b16 %v592, %v591
        %v603 = vpack.c.b16 %v594, %v593
        %v604 = vpack.c.b16 %v596, %v595
        %613 = vmatprep.subr.bf16.mxu0 0
        %614 = vmatpush1.bf16.msra.mxu0 %v604
        %615 = vmatprep.subr.bf16.mxu0 0
        %616 = vmatpush1.bf16.msra.mxu0 %v603
        %617 = vmatprep.subr.bf16.mxu0 0
        %618 = vmatpush1.bf16.msra.mxu0 %v602
        %619 = vmatprep.subr.bf16.mxu0 0
        %620 = vmatpush1.bf16.msra.mxu0 %v601
        %621 = vmatprep.subr.bf16.mxu0 0
        %622 = vmatpush1.bf16.msra.mxu0 %v600
        %623 = vmatprep.subr.bf16.mxu0 0
        %624 = vmatpush1.bf16.msra.mxu0 %v599
        %625 = vmatprep.subr.bf16.mxu0 0
        %626 = vmatpush1.bf16.msra.mxu0 %v598
        %627 = vmatprep.subr.bf16.mxu0 0
        %628 = vmatpush1.bf16.msra.mxu0 %v597
        %629 = vmatprep.subr.bf16.mxu0 0
        %630 = vmatpush2.bf16.msra.mxu0 0
        %631 = vmatprep.subr.bf16.mxu0 0
        %632 = vmatpush2.bf16.msra.mxu0 0
        %633 = vmatprep.subr.bf16.mxu0 0
        %634 = vmatpush2.bf16.msra.mxu0 0
        %635 = vmatprep.subr.bf16.mxu0 0
        %636 = vmatpush2.bf16.msra.mxu0 0
        %637 = vmatprep.subr.bf16.mxu0 0
        %638 = vmatpush2.bf16.msra.mxu0 0
        %639 = vmatprep.subr.bf16.mxu0 0
        %640 = vmatpush2.bf16.msra.mxu0 0
        %641 = vmatprep.subr.bf16.mxu0 0
        %642 = vmatpush2.bf16.msra.mxu0 0
        %643 = vmatprep.subr.bf16.mxu0 0
        %644 = vmatpush2.bf16.msra.mxu0 0
        %645 = vmatprep.mubr.bf16.mxu0 0
        %646 = vmatmul.mubr.bf16.gmra.mxu0 %v534
        %v647 = vpop.f32.mrf.mxu0
        %v648 = vadd.f32 %v563, %v647
        %v649 = vpop.f32.mrf.mxu0
        %v650 = vpop.f32.mrf.mxu0
        %v651 = vadd.f32 %v563, %v650
        %v652 = vpop.f32.mrf.mxu0
        %653 = vmatprep.mubr.bf16.mxu0 0
        %654 = vmatmul.mubr.bf16.gmra.mxu0 %v535
        %v655 = vpop.f32.mrf.mxu0
        %v656 = vadd.f32 %v563, %v655
        %v657 = vpop.f32.mrf.mxu0
        %v658 = vpop.f32.mrf.mxu0
        %v659 = vadd.f32 %v563, %v658
        %v660 = vpop.f32.mrf.mxu0
        %661 = vmatprep.mubr.bf16.mxu0 0
        %662 = vmatmul.mubr.bf16.gmra.mxu0 %v536
        %v663 = vpop.f32.mrf.mxu0
        %v664 = vadd.f32 %v563, %v663
        %v665 = vpop.f32.mrf.mxu0
        %v666 = vpop.f32.mrf.mxu0
        %v667 = vadd.f32 %v563, %v666
        %v668 = vpop.f32.mrf.mxu0
        %669 = vmatprep.mubr.bf16.mxu0 0
        %670 = vmatmul.mubr.bf16.gmra.mxu0 %v537
        %v671 = vpop.f32.mrf.mxu0
        %v672 = vadd.f32 %v563, %v671
        %v673 = vpop.f32.mrf.mxu0
        %v674 = vpop.f32.mrf.mxu0
        %v675 = vadd.f32 %v563, %v674
        %v676 = vpop.f32.mrf.mxu0
        %677 = vmatprep.mubr.bf16.mxu0 0
        %678 = vmatmul.mubr.bf16.gmra.mxu0 %v538
        %v679 = vpop.f32.mrf.mxu0
        %v680 = vadd.f32 %v563, %v679
        %v681 = vpop.f32.mrf.mxu0
        %v682 = vpop.f32.mrf.mxu0
        %v683 = vadd.f32 %v563, %v682
        %v684 = vpop.f32.mrf.mxu0
        %685 = vmatprep.mubr.bf16.mxu0 0
        %686 = vmatmul.mubr.bf16.gmra.mxu0 %v539
        %v687 = vpop.f32.mrf.mxu0
        %v688 = vadd.f32 %v563, %v687
        %v689 = vpop.f32.mrf.mxu0
        %v690 = vpop.f32.mrf.mxu0
        %v691 = vadd.f32 %v563, %v690
        %v692 = vpop.f32.mrf.mxu0
        %693 = vmatprep.mubr.bf16.mxu0 0
        %694 = vmatmul.mubr.bf16.gmra.mxu0 %v540
        %v695 = vpop.f32.mrf.mxu0
        %v696 = vadd.f32 %v563, %v695
        %v697 = vpop.f32.mrf.mxu0
        %v698 = vpop.f32.mrf.mxu0
        %v699 = vadd.f32 %v563, %v698
        %v700 = vpop.f32.mrf.mxu0
        %701 = vmatprep.mubr.bf16.mxu0 0
        %702 = vmatmul.mubr.bf16.gmra.mxu0 %v541
        %v703 = vpop.f32.mrf.mxu0
        %v704 = vadd.f32 %v563, %v703
        %v705 = vpop.f32.mrf.mxu0
        %v706 = vpop.f32.mrf.mxu0
        %v707 = vadd.f32 %v563, %v706
        %v708 = vpop.f32.mrf.mxu0
        %709 = vdwg.mxu0
        %v710 = vld [vmem:[%s298] sm:$0xff]
        %v711 = vld [vmem:[%s298 + $0x8] sm:$0xff]
        %v712 = vld [vmem:[%s298 + $0x10] sm:$0xff]
        %v713 = vld [vmem:[%s298 + $0x18] sm:$0xff]
        %v714 = vld [vmem:[%s298 + $0x20] sm:$0xff]
        %v715 = vld [vmem:[%s298 + $0x28] sm:$0xff]
        %v716 = vld [vmem:[%s298 + $0x30] sm:$0xff]
        %v717 = vld [vmem:[%s298 + $0x38] sm:$0xff]
        %v718 = vld [vmem:[%s298 + $0x40] sm:$0xff]
        %v719 = vld [vmem:[%s298 + $0x48] sm:$0xff]
        %v720 = vld [vmem:[%s298 + $0x50] sm:$0xff]
        %v721 = vld [vmem:[%s298 + $0x58] sm:$0xff]
        %v722 = vld [vmem:[%s298 + $0x60] sm:$0xff]
        %v723 = vld [vmem:[%s298 + $0x68] sm:$0xff]
        %v724 = vld [vmem:[%s298 + $0x70] sm:$0xff]
        %v725 = vld [vmem:[%s298 + $0x78] sm:$0xff]
        %v726 = vmax.f32 %v648, %v664
        %v727 = vmax.f32 %v651, %v667
        %v728 = vmax.f32 %v656, %v672
        %v729 = vmax.f32 %v659, %v675
        %v730 = vmax.f32 %v726, %v680
        %v731 = vmax.f32 %v727, %v683
        %v732 = vmax.f32 %v728, %v688
        %v733 = vmax.f32 %v729, %v691
        %v734 = vmax.f32 %v730, %v696
        %v735 = vmax.f32 %v731, %v699
        %v736 = vmax.f32 %v732, %v704
        %v737 = vmax.f32 %v733, %v707
        %v738 = vmax.f32 %v734, %v735
        %v739 = vmax.f32 %v736, %v737
        %v740 = vmax.f32 %v738, %v739
        %v741 = vrot.slane %v740, 4
        %v742 = vmax.f32 %v740, %v741
        %v743 = vrot.slane %v742, 2
        %v744 = vmax.f32 %v742, %v743
        %v745 = vrot.slane %v744, 1
        %v746 = vmax.f32 %v744, %v745
        %v747 = vld [vmem:[#allocation2] sm:$0x1]
        %v748 = vmax.f32 %v747, %v746
        %v749 = vsub.f32 %v747, %v748
        %v750 = vmul.f32 %v749, 1.442695
        %v751 = vpow.pop %v750
        %v753 = vlaneseq
        %v754 = vshrl.u32 %v753, 7
        %v755 = vsub.s32 0, %v754
        %v756 = vrot.slane %v748, %v755
        %v758 = vsub.f32 %v648, %v756
        %v759 = vsub.f32 %v651, %v756
        %v760 = vsub.f32 %v656, %v756
        %v761 = vsub.f32 %v659, %v756
        %v762 = vsub.f32 %v664, %v756
        %v763 = vsub.f32 %v667, %v756
        %v764 = vsub.f32 %v672, %v756
        %v765 = vsub.f32 %v675, %v756
        %v766 = vsub.f32 %v680, %v756
        %v767 = vsub.f32 %v683, %v756
        %v768 = vsub.f32 %v688, %v756
        %v769 = vsub.f32 %v691, %v756
        %v770 = vsub.f32 %v696, %v756
        %v771 = vsub.f32 %v699, %v756
        %v772 = vsub.f32 %v704, %v756
        %v773 = vsub.f32 %v707, %v756
        %v774 = vmul.f32 %v758, 1.442695
        %v775 = vpow.pop %v774
        %v776 = vmul.f32 %v759, 1.442695
        %v777 = vpow.pop %v776
        %v778 = vmul.f32 %v760, 1.442695
        %v779 = vpow.pop %v778
        %v780 = vmul.f32 %v761, 1.442695
        %v781 = vpow.pop %v780
        %v782 = vmul.f32 %v762, 1.442695
        %v783 = vpow.pop %v782
        %v784 = vmul.f32 %v763, 1.442695
        %v785 = vpow.pop %v784
        %v786 = vmul.f32 %v764, 1.442695
        %v787 = vpow.pop %v786
        %v788 = vmul.f32 %v765, 1.442695
        %v789 = vpow.pop %v788
        %v790 = vmul.f32 %v766, 1.442695
        %v791 = vpow.pop %v790
        %v792 = vmul.f32 %v767, 1.442695
        %v793 = vpow.pop %v792
        %v794 = vmul.f32 %v768, 1.442695
        %v795 = vpow.pop %v794
        %v796 = vmul.f32 %v769, 1.442695
        %v797 = vpow.pop %v796
        %v798 = vmul.f32 %v770, 1.442695
        %v799 = vpow.pop %v798
        %v800 = vmul.f32 %v771, 1.442695
        %v801 = vpow.pop %v800
        %v802 = vmul.f32 %v772, 1.442695
        %v803 = vpow.pop %v802
        %v804 = vmul.f32 %v773, 1.442695
        %v805 = vpow.pop %v804
        %v806 = vld [vmem:[#allocation3] sm:$0x1]
        %v807 = vmul.f32 %v751, %v806
        %v808 = vadd.f32 %v775, %v777
        %v809 = vadd.f32 %v808, %v779
        %v810 = vadd.f32 %v809, %v781
        %v811 = vadd.f32 %v810, %v783
        %v812 = vadd.f32 %v811, %v785
        %v813 = vadd.f32 %v812, %v787
        %v814 = vadd.f32 %v813, %v789
        %v815 = vadd.f32 %v814, %v791
        %v816 = vadd.f32 %v815, %v793
        %v817 = vadd.f32 %v816, %v795
        %v818 = vadd.f32 %v817, %v797
        %v819 = vadd.f32 %v818, %v799
        %v820 = vadd.f32 %v819, %v801
        %v821 = vadd.f32 %v820, %v803
        %v822 = vadd.f32 %v821, %v805
        %v823 = vrot.slane %v822, 4
        %v824 = vadd.f32 %v822, %v823
        %v825 = vrot.slane %v824, 2
        %v826 = vadd.f32 %v824, %v825
        %v827 = vrot.slane %v826, 1
        %v828 = vadd.f32 %v826, %v827
        %v829 = vadd.f32 %v807, %v828
        %830 = vst [vmem:[#allocation3] sm:$0x1] %v829
        %v831 = vld [vmem:[#allocation4] sm:$0x1]
        %v832 = vmul.f32 %v751, %v831
        %834 = vset.pattern.permute.xlu0 0
        %835 = vperm.xlu0 %834, %v710
        %v836 = vpop.permute.xlu0 %835
        %839 = vset.pattern.permute.xlu0 0
        %840 = vperm.xlu0 %839, %v711
        %v841 = vpop.permute.xlu0 %840
        %844 = vset.pattern.permute.xlu0 0
        %845 = vperm.xlu0 %844, %v712
        %v846 = vpop.permute.xlu0 %845
        %849 = vset.pattern.permute.xlu0 0
        %850 = vperm.xlu0 %849, %v713
        %v851 = vpop.permute.xlu0 %850
        %854 = vset.pattern.permute.xlu0 0
        %855 = vperm.xlu0 %854, %v714
        %v856 = vpop.permute.xlu0 %855
        %859 = vset.pattern.permute.xlu0 0
        %860 = vperm.xlu0 %859, %v715
        %v861 = vpop.permute.xlu0 %860
        %864 = vset.pattern.permute.xlu0 0
        %865 = vperm.xlu0 %864, %v716
        %v866 = vpop.permute.xlu0 %865
        %869 = vset.pattern.permute.xlu0 0
        %870 = vperm.xlu0 %869, %v717
        %v871 = vpop.permute.xlu0 %870
        %874 = vset.pattern.permute.xlu0 0
        %875 = vperm.xlu0 %874, %v718
        %v876 = vpop.permute.xlu0 %875
        %879 = vset.pattern.permute.xlu0 0
        %880 = vperm.xlu0 %879, %v719
        %v881 = vpop.permute.xlu0 %880
        %884 = vset.pattern.permute.xlu0 0
        %885 = vperm.xlu0 %884, %v720
        %v886 = vpop.permute.xlu0 %885
        %889 = vset.pattern.permute.xlu0 0
        %890 = vperm.xlu0 %889, %v721
        %v891 = vpop.permute.xlu0 %890
        %894 = vset.pattern.permute.xlu0 0
        %895 = vperm.xlu0 %894, %v722
        %v896 = vpop.permute.xlu0 %895
        %899 = vset.pattern.permute.xlu0 0
        %900 = vperm.xlu0 %899, %v723
        %v901 = vpop.permute.xlu0 %900
        %904 = vset.pattern.permute.xlu0 0
        %905 = vperm.xlu0 %904, %v724
        %v906 = vpop.permute.xlu0 %905
        %909 = vset.pattern.permute.xlu0 0
        %910 = vperm.xlu0 %909, %v725
        %v911 = vpop.permute.xlu0 %910
        %v913 = vmul.f32 %v775, %v836
        %v914 = vmul.f32 %v777, %v841
        %v915 = vmul.f32 %v779, %v846
        %v916 = vmul.f32 %v781, %v851
        %v917 = vmul.f32 %v783, %v856
        %v918 = vmul.f32 %v785, %v861
        %v919 = vmul.f32 %v787, %v866
        %v920 = vmul.f32 %v789, %v871
        %v921 = vmul.f32 %v791, %v876
        %v922 = vmul.f32 %v793, %v881
        %v923 = vmul.f32 %v795, %v886
        %v924 = vmul.f32 %v797, %v891
        %v925 = vmul.f32 %v799, %v896
        %v926 = vmul.f32 %v801, %v901
        %v927 = vmul.f32 %v803, %v906
        %v928 = vmul.f32 %v805, %v911
        %v929 = vadd.f32 %v913, %v914
        %v930 = vadd.f32 %v929, %v915
        %v931 = vadd.f32 %v930, %v916
        %v932 = vadd.f32 %v931, %v917
        %v933 = vadd.f32 %v932, %v918
        %v934 = vadd.f32 %v933, %v919
        %v935 = vadd.f32 %v934, %v920
        %v936 = vadd.f32 %v935, %v921
        %v937 = vadd.f32 %v936, %v922
        %v938 = vadd.f32 %v937, %v923
        %v939 = vadd.f32 %v938, %v924
        %v940 = vadd.f32 %v939, %v925
        %v941 = vadd.f32 %v940, %v926
        %v942 = vadd.f32 %v941, %v927
        %v943 = vadd.f32 %v942, %v928
        %v944 = vrot.slane %v943, 4
        %v945 = vadd.f32 %v943, %v944
        %v946 = vrot.slane %v945, 2
        %v947 = vadd.f32 %v945, %v946
        %v948 = vrot.slane %v947, 1
        %v949 = vadd.f32 %v947, %v948
        %v950 = vadd.f32 %v832, %v949
        %951 = vst [vmem:[#allocation4] sm:$0x1] %v950
        %v952 = vld [vmem:[#allocation5] sm:$0x1]
        %v953 = vmul.f32 %v751, %v952
        %954 = vset.pattern.permute.xlu0 1
        %955 = vperm.xlu0 %954, %v710
        %v956 = vpop.permute.xlu0 %955
        %958 = vset.pattern.permute.xlu0 1
        %959 = vperm.xlu0 %958, %v711
        %v960 = vpop.permute.xlu0 %959
        %962 = vset.pattern.permute.xlu0 1
        %963 = vperm.xlu0 %962, %v712
        %v964 = vpop.permute.xlu0 %963
        %966 = vset.pattern.permute.xlu0 1
        %967 = vperm.xlu0 %966, %v713
        %v968 = vpop.permute.xlu0 %967
        %970 = vset.pattern.permute.xlu0 1
        %971 = vperm.xlu0 %970, %v714
        %v972 = vpop.permute.xlu0 %971
        %974 = vset.pattern.permute.xlu0 1
        %975 = vperm.xlu0 %974, %v715
        %v976 = vpop.permute.xlu0 %975
        %978 = vset.pattern.permute.xlu0 1
        %979 = vperm.xlu0 %978, %v716
        %v980 = vpop.permute.xlu0 %979
        %982 = vset.pattern.permute.xlu0 1
        %983 = vperm.xlu0 %982, %v717
        %v984 = vpop.permute.xlu0 %983
        %986 = vset.pattern.permute.xlu0 1
        %987 = vperm.xlu0 %986, %v718
        %v988 = vpop.permute.xlu0 %987
        %990 = vset.pattern.permute.xlu0 1
        %991 = vperm.xlu0 %990, %v719
        %v992 = vpop.permute.xlu0 %991
        %994 = vset.pattern.permute.xlu0 1
        %995 = vperm.xlu0 %994, %v720
        %v996 = vpop.permute.xlu0 %995
        %998 = vset.pattern.permute.xlu0 1
        %999 = vperm.xlu0 %998, %v721
        %v1000 = vpop.permute.xlu0 %999
        %1002 = vset.pattern.permute.xlu0 1
        %1003 = vperm.xlu0 %1002, %v722
        %v1004 = vpop.permute.xlu0 %1003
        %1006 = vset.pattern.permute.xlu0 1
        %1007 = vperm.xlu0 %1006, %v723
        %v1008 = vpop.permute.xlu0 %1007
        %1010 = vset.pattern.permute.xlu0 1
        %1011 = vperm.xlu0 %1010, %v724
        %v1012 = vpop.permute.xlu0 %1011
        %1014 = vset.pattern.permute.xlu0 1
        %1015 = vperm.xlu0 %1014, %v725
        %v1016 = vpop.permute.xlu0 %1015
        %v1018 = vmul.f32 %v775, %v956
        %v1019 = vmul.f32 %v777, %v960
        %v1020 = vmul.f32 %v779, %v964
        %v1021 = vmul.f32 %v781, %v968
        %v1022 = vmul.f32 %v783, %v972
        %v1023 = vmul.f32 %v785, %v976
        %v1024 = vmul.f32 %v787, %v980
        %v1025 = vmul.f32 %v789, %v984
        %v1026 = vmul.f32 %v791, %v988
        %v1027 = vmul.f32 %v793, %v992
        %v1028 = vmul.f32 %v795, %v996
        %v1029 = vmul.f32 %v797, %v1000
        %v1030 = vmul.f32 %v799, %v1004
        %v1031 = vmul.f32 %v801, %v1008
        %v1032 = vmul.f32 %v803, %v1012
        %v1033 = vmul.f32 %v805, %v1016
        %v1034 = vadd.f32 %v1018, %v1019
        %v1035 = vadd.f32 %v1034, %v1020
        %v1036 = vadd.f32 %v1035, %v1021
        %v1037 = vadd.f32 %v1036, %v1022
        %v1038 = vadd.f32 %v1037, %v1023
        %v1039 = vadd.f32 %v1038, %v1024
        %v1040 = vadd.f32 %v1039, %v1025
        %v1041 = vadd.f32 %v1040, %v1026
        %v1042 = vadd.f32 %v1041, %v1027
        %v1043 = vadd.f32 %v1042, %v1028
        %v1044 = vadd.f32 %v1043, %v1029
        %v1045 = vadd.f32 %v1044, %v1030
        %v1046 = vadd.f32 %v1045, %v1031
        %v1047 = vadd.f32 %v1046, %v1032
        %v1048 = vadd.f32 %v1047, %v1033
        %v1049 = vrot.slane %v1048, 4
        %v1050 = vadd.f32 %v1048, %v1049
        %v1051 = vrot.slane %v1050, 2
        %v1052 = vadd.f32 %v1050, %v1051
        %v1053 = vrot.slane %v1052, 1
        %v1054 = vadd.f32 %v1052, %v1053
        %v1055 = vadd.f32 %v953, %v1054
        %1056 = vst [vmem:[#allocation5] sm:$0x1] %v1055
        %1057 = vst [vmem:[#allocation2] sm:$0x1] %v748
        %p1058 = scmp.eq.s32.totalorder %s25, 1
        // Predicated region
        $region49: #{tpu_custom_call.1} parent=43 // pred_check
          %p1059 = pneg %p1058
        $region50: #{tpu_custom_call.1} parent=43 // pred_check_branch
          %1061 = sbr.rel (%p1059) target = $region52
        $region51: #{tpu_custom_call.1} parent=43 // pred_region
          %v1062 = vld [vmem:[#allocation3] sm:$0x1]
          %v1063 = vrcp.pop %v1062
          %v1064 = vld [vmem:[#allocation4] sm:$0x1]
          %v1065 = vmul.f32 %v1064, %v1063
          %v1066 = vmul.f32 %v1065, 0.0625
          %v1067 = vld [vmem:[#allocation5] sm:$0x1]
          %v1068 = vmul.f32 %v1067, %v1063
          %v1069 = vmul.f32 %v1068, 0.0625
          %v1071 = vlaneseq
          %v1072 = vshrl.u32 %v1071, 7
          %v1073 = vsub.s32 0, %v1072
          %v1074 = vrot.slane %v1069, %v1073
          %vm1076 = vcmask 1040384
          %v1077 = vsel %vm1076, %v1066, %v1074
          %1078 = vst [vmem:[%s283] sm:$0x3] %v1077
        $region52: #{tpu_custom_call.1} parent=43 // pred_fallthru
          _
        %s1079 = sand.u32 %s178, 1
        %s1080 = scalar_lea.sflag [#allocation7], %s1079
        %s1081 = sand.u32 %s178, 1
        %s1082 = smul.addr %s1081, 2
        %s1083 = scalar_lea.vmem [#allocation6], %s1082
        // Predicated region
        $region53: #{tpu_custom_call.1} parent=43 // pred_check
          %p1084 = pneg %p188
        $region54: #{tpu_custom_call.1} parent=43 // pred_check_branch
          %1086 = sbr.rel (%p1084) target = $region56
        $region55: #{tpu_custom_call.1} parent=43 // pred_region
          %s1088 = ssub.s32 32, 32
          %1089 = vsyncadd %s1080, %s1088
          %s1090 = smul.addr %s24, 32
          %s1091 = scalar_lea.hbm %s6, %s1090
          %s1093 = sshll.u32 %s1083, 4
          %s1094 = int_to_ptr.vmem [resolvable:$true] %s1093
          %1096 = dma.vmem_to_hbm [thread:$0]  %s1094, 32, %s1091, %s1080
        $region56: #{tpu_custom_call.1} parent=43 // pred_fallthru
          _
      $region44: #{tpu_custom_call.1} parent=5 // pred_fallthru
        _
      %p1097 = scmp.le.s32.totalorder 2, %s15
      // Predicated region
      $region57: #{tpu_custom_call.1} parent=5 // pred_check
        %p1098 = pneg %p1097
      $region58: #{tpu_custom_call.1} parent=5 // pred_check_branch
        %1100 = sbr.rel (%p1098) target = $region60
      $region59: #{tpu_custom_call.1} parent=5 // pred_region
        %s1101 = ssub.s32 %s15, 2
        // Predicated region
        $region61: #{tpu_custom_call.1} parent=59 // pred_check
          %p1102 = pneg %p194
        $region62: #{tpu_custom_call.1} parent=59 // pred_check_branch
          %1104 = sbr.rel (%p1102) target = $region64
        $region63: #{tpu_custom_call.1} parent=59 // pred_region
          %s1105 = sand.u32 %s179, 1
          %s1106 = scalar_lea.sflag [#allocation7], %s1105
          %s1107 = sand.u32 %s179, 1
          %s1108 = smul.addr %s1107, 2
          %s1109 = scalar_lea.vmem [#allocation6], %s1108
          %1110 = dma.done %s1106, 32
        $region64: #{tpu_custom_call.1} parent=59 // pred_fallthru
          _
      $region60: #{tpu_custom_call.1} parent=5 // pred_fallthru
        _
    $region6: #{tpu_custom_call.1} parent=1 // loop_footer
      %s19 = sadd.s32 1, %s15
    $region7: #{tpu_custom_call.1} parent=1 // loop_footer_branch
      %14 = sbr.rel target = $region3
    $region8: #{tpu_custom_call.1} parent=1 // loop_exit
      _
    %1111 = vsyncpa [#allocation7], 1
    %s1112 = scalar_lea.sflag [#allocation7], 1
    %1113 = vsyncpa %s1112, 1

</llo_original>
